<compile_context>
chip_gen: v7x
topology: tpu7x:2x2x1
jax: 0.10.0
libtpu: 0.0.40
codegen_flags: <defaults>
</compile_context>

<pallas_src>
import jax
import jax.numpy as jnp
from jax.experimental import pallas as pl
from jax.experimental.pallas import tpu as pltpu


# ---------------------------------------------------------------------------
# Generation-aware VMEM budgeting
# ---------------------------------------------------------------------------
def _vmem_limit_bytes():
    """Scoped-VMEM limit: ~48 MiB on v7x (64 MiB phys), ~110 MiB on v5e/v6e (128 MiB)."""
    try:
        cap = int(pltpu.get_tpu_info().vmem_capacity_bytes)
    except Exception:
        return 64 * 1024 * 1024                     # proven-safe default
    return max(32 * 1024 * 1024, min(cap - 16 * 1024 * 1024, 110 * 1024 * 1024))


# ---------------------------------------------------------------------------
# Kernel 1: 2x2 stride-2 transposed conv, row-tiled, interleaved output layout.
#   out[n*H+i, ky, j, kx*Cout+o] = sum_c x[n,i,j,c] * w[c,ky,kx,o] + b[o]
#   row-major (N*H, 2, W, 2*Cout) == row-major (N, 2H, 2W, Cout)  -> free reshape.
# ---------------------------------------------------------------------------
def _upconv2x2_kernel(a_ref, w_ref, b_ref, o_ref):
    # a_ref: (TH, W, Cin); w_ref: (2, Cin, 2*Cout); b_ref: (1, 2*Cout);
    # o_ref: (TH, 2, W, 2*Cout)
    TH, W, Cin = a_ref.shape
    C2 = w_ref.shape[2]
    a = a_ref[...].reshape(TH * W, Cin)
    for ky in range(2):
        r = jnp.dot(a, w_ref[ky], preferred_element_type=jnp.float32) + b_ref[...]
        o_ref[:, ky, :, :] = r.reshape(TH, W, C2).astype(o_ref.dtype)


def _pick_row_tile(M, budget_rows):
    cap = max(1, min(int(budget_rows), M))
    if M >= 2:
        cap = min(cap, pl.cdiv(M, 2))      # >= 2 grid steps: pipelining + v7x 2-TC sharding
    divs = [d for d in range(1, cap + 1) if M % d == 0]
    div8 = [d for d in divs if d % 8 == 0]
    if div8:
        return max(div8)
    best = max(divs)
    if 4 * best >= cap or M <= 8:
        return best
    return cap                              # non-dividing tile; Pallas clips the tail block


def upconv2x2_stride2(x_nhwc, w_up, b_up, *, vmem_limit=None):
    # x: (N, H, W, Cin); w_up: (Cin, 2, 2, Cout); b_up: (Cout,)
    N, H, W, Cin = x_nhwc.shape
    Cout = w_up.shape[-1]
    M = N * H
    if vmem_limit is None:
        vmem_limit = _vmem_limit_bytes()
    ds = jnp.dtype(x_nhwc.dtype).itemsize

    a = x_nhwc.reshape(M, W, Cin)                               # free view
    wm = w_up.transpose(1, 0, 2, 3).reshape(2, Cin, 2 * Cout)   # (ky, c, kx*Cout+o), tiny
    bm = jnp.tile(b_up.astype(jnp.float32), 2).reshape(1, 2 * Cout)

    # per-row bytes: double-buffered input row + 2x-larger interleaved output row (+f32 work)
    per_row = 2 * ds * W * (Cin + 4 * Cout) + 8 * W * Cout
    budget_rows = max(1, int(0.55 * vmem_limit) // max(per_row, 1))
    TH = _pick_row_tile(M, budget_rows)

    flops = 2 * M * W * Cin * 4 * Cout
    bytes_accessed = int(ds * (a.size + M * 2 * W * 2 * Cout) + 4 * wm.size)

    out = pl.pallas_call(
        _upconv2x2_kernel,
        out_shape=jax.ShapeDtypeStruct((M, 2, W, 2 * Cout), x_nhwc.dtype),
        grid=(pl.cdiv(M, TH),),
        in_specs=[pl.BlockSpec((TH, W, Cin), lambda i: (i, 0, 0)),
                  pl.BlockSpec((2, Cin, 2 * Cout), lambda i: (0, 0, 0)),
                  pl.BlockSpec((1, 2 * Cout), lambda i: (0, 0))],
        out_specs=pl.BlockSpec((TH, 2, W, 2 * Cout), lambda i: (i, 0, 0, 0)),
        compiler_params=pltpu.CompilerParams(
            dimension_semantics=("parallel",),
            vmem_limit_bytes=vmem_limit),
        cost_estimate=pl.CostEstimate(flops=flops, transcendentals=0,
                                      bytes_accessed=bytes_accessed),
    )(a, wm, bm)
    # pure view: no transpose, no extra HBM pass
    return out.reshape(N, 2 * H, 2 * W, Cout)


# ---------------------------------------------------------------------------
# Kernel 2: fused [concat -> conv3x3+ReLU -> conv3x3+ReLU], row-slab tiled with
#           2-row halos (conv1 computes TR+2 h rows so conv2 needs no cross-slab data).
# ---------------------------------------------------------------------------
def _zero_cols(dst, Wo):
    # zero the 1-px left/right column border of a (R, Wo+2, C) VMEM slab (cheap).
    R, _, C = dst.shape
    z = jnp.zeros((R, 1, C), dst.dtype)
    dst[:, 0:1, :] = z
    dst[:, Wo + 1:Wo + 2, :] = z


def _fill_padded_slab(dst, main_ref, top_ref, bot_ref, t, tlast, TR, Wo):
    # dst: VMEM (TR+4, Wo+2, C). rows [0:2]=top halo, [2:TR+2]=main, [TR+2:TR+4]=bottom halo.
    # Only the borders are zeroed; the interior is fully overwritten every step and all
    # writes depend only on (n, t) -> safe under megacore grid sharding.
    C = dst.shape[-1]
    _zero_cols(dst, Wo)
    dst[2:TR + 2, 1:Wo + 1, :] = main_ref[0].astype(dst.dtype)
    zrows = jnp.zeros((2, Wo, C), dst.dtype)

    @pl.when(t == 0)                       # image top: zero padding rows
    def _():
        dst[0:2, 1:Wo + 1, :] = zrows

    @pl.when(t > 0)                        # interior: 2-row halo from the neighbouring slab
    def _():
        dst[0:2, 1:Wo + 1, :] = top_ref[0].astype(dst.dtype)

    @pl.when(t == tlast)                   # image bottom: zero padding rows
    def _():
        dst[TR + 2:TR + 4, 1:Wo + 1, :] = zrows

    @pl.when(t < tlast)
    def _():
        dst[TR + 2:TR + 4, 1:Wo + 1, :] = bot_ref[0].astype(dst.dtype)


def _conv3x3_accum(acc, src_pad, w_ref, n_rows, Wo, cin):
    # src_pad: VMEM ref (n_rows+2, Wo+2, cin); w_ref: (3, 3*cin, Cout).
    # Chained local accumulation -> no acc-Ref read-modify-write round trips.
    for ky in range(3):
        rows = src_pad[ky:ky + n_rows, :, :]               # (n_rows, Wo+2, cin)
        wk = w_ref[ky]                                      # (3*cin, Cout)
        for kx in range(3):
            patch = rows[:, kx:kx + Wo, :].reshape(n_rows * Wo, cin)
            acc = acc + jnp.dot(patch, wk[kx * cin:(kx + 1) * cin, :],
                                preferred_element_type=jnp.float32)
    return acc


def _fused_convblock_kernel(up_m, up_t, up_b, br_m, br_t, br_b,
                            w1u_ref, w1b_ref, w2_ref, b1_ref, b2_ref,
                            o_ref, up_pad, br_pad, h_pad):
    t = pl.program_id(1)
    tlast = pl.num_programs(1) - 1
    _, TR, Wo, Cout = o_ref.shape
    Cu = up_m.shape[-1]
    Cb = br_m.shape[-1]
    nh = TR + 2            # conv1 produces TR+2 h rows (1 halo row each side for conv2)

    # assemble zero-padded input slabs in VMEM (concat fused via split conv1 weights)
    _fill_padded_slab(up_pad, up_m, up_t, up_b, t, tlast, TR, Wo)
    _fill_padded_slab(br_pad, br_m, br_t, br_b, t, tlast, TR, Wo)

    # conv1 + bias + ReLU over the halo'd rows, accumulate in f32
    acc = jnp.zeros((nh * Wo, Cout), jnp.float32)
    acc = _conv3x3_accum(acc, up_pad, w1u_ref, nh, Wo, Cu)
    acc = _conv3x3_accum(acc, br_pad, w1b_ref, nh, Wo, Cb)
    h = jnp.maximum(acc + b1_ref[...], 0.0).reshape(nh, Wo, Cout)

    # stage h into a padded VMEM slab for conv2; at the image edges the boundary h row
    # is conv2's zero padding and must override the (garbage) halo compute.
    _zero_cols(h_pad, Wo)
    h_pad[:, 1:Wo + 1, :] = h.astype(h_pad.dtype)
    zrow = jnp.zeros((1, Wo, Cout), h_pad.dtype)

    @pl.when(t == 0)
    def _():
        h_pad[0:1, 1:Wo + 1, :] = zrow

    @pl.when(t == tlast)
    def _():
        h_pad[nh - 1:nh, 1:Wo + 1, :] = zrow

    # conv2 + bias + ReLU; single store of the output slab, cast only at the store
    acc2 = jnp.zeros((TR * Wo, Cout), jnp.float32)
    acc2 = _conv3x3_accum(acc2, h_pad, w2_ref, TR, Wo, Cout)
    out = jnp.maximum(acc2 + b2_ref[...], 0.0)
    o_ref[...] = out.reshape(1, TR, Wo, Cout).astype(o_ref.dtype)


def _pick_slab_rows(Ho, budget_rows):
    cap = max(2, min(int(budget_rows), Ho))
    if Ho >= 4:
        cap = min(cap, Ho // 2)            # >= 2 row tiles: pipelining + v7x 2-TC sharding
    divs = [d for d in range(2, cap + 1, 2) if Ho % d == 0]
    if divs:
        return max(divs)
    return Ho                              # TODO(synk): masked tail for odd/awkward Ho


def fused_double_conv3x3_relu(up, bridge, w1, b1, w2, b2, *, vmem_limit=None):
    N, Ho, Wo, Cu = up.shape
    Cb = bridge.shape[-1]
    Cout = w1.shape[-1]
    assert bridge.shape[:3] == (N, Ho, Wo), (up.shape, bridge.shape)
    assert w1.shape == (3, 3, Cu + Cb, Cout) and w2.shape == (3, 3, Cout, Cout)
    assert Ho % 2 == 0, "upconv output height is always even"

    if vmem_limit is None:
        vmem_limit = _vmem_limit_bytes()
    ds = jnp.dtype(up.dtype).itemsize

    # slab rows from a VMEM byte budget: double-buffered I/O slabs + padded scratches
    # + the f32 accumulation / h intermediates.
    per_row = 3 * ds * Wo * (Cu + Cb + Cout) + 12 * Wo * Cout
    fixed = (2 * ds * 9 * ((Cu + Cb) * Cout + Cout * Cout)      # weights (double-buffered)
             + 8 * ds * Wo * (Cu + Cb)                          # halo blocks
             + (2 << 20))                                       # slack
    budget_rows = max(2, (int(0.55 * vmem_limit) - fixed) // max(per_row, 1))
    TR = _pick_slab_rows(Ho, budget_rows)
    T = Ho // TR
    TRX = TR // 2                    # 2-row halo blocks -> indexed in units of 2 rows

    # split w1 -> concat never materialized; flatten (kx, c) into the contraction dim
    w1u = w1[:, :, :Cu, :].reshape(3, 3 * Cu, Cout)
    w1b = w1[:, :, Cu:, :].reshape(3, 3 * Cb, Cout)
    w2f = w2.reshape(3, 3 * Cout, Cout)
    b1r = b1.reshape(1, Cout).astype(jnp.float32)
    b2r = b2.reshape(1, Cout).astype(jnp.float32)

    def main_map(n, t):
        return (n, t, 0, 0)

    def halo_top_map(n, t):          # rows [t*TR-2, t*TR), clamped at the image top
        return (n, jnp.maximum(t * TRX - 1, 0), 0, 0)

    def halo_bot_map(n, t):          # rows [t*TR+TR, t*TR+TR+2), clamped at the bottom
        return (n, jnp.minimum((t + 1) * TRX, Ho // 2 - 1), 0, 0)

    def const_map3(n, t):
        return (0, 0, 0)

    def const_map2(n, t):
        return (0, 0)

    flops = 2 * N * Ho * Wo * 9 * ((Cu + Cb) * Cout + Cout * Cout)
    bytes_accessed = int(ds * (up.size + bridge.size + N * Ho * Wo * Cout)
                         + jnp.dtype(w1.dtype).itemsize * (w1.size + w2.size))

    return pl.pallas_call(
        _fused_convblock_kernel,
        out_shape=jax.ShapeDtypeStruct((N, Ho, Wo, Cout), up.dtype),
        grid=(N, T),
        in_specs=[
            pl.BlockSpec((1, TR, Wo, Cu), main_map),
            pl.BlockSpec((1, 2, Wo, Cu), halo_top_map),
            pl.BlockSpec((1, 2, Wo, Cu), halo_bot_map),
            pl.BlockSpec((1, TR, Wo, Cb), main_map),
            pl.BlockSpec((1, 2, Wo, Cb), halo_top_map),
            pl.BlockSpec((1, 2, Wo, Cb), halo_bot_map),
            pl.BlockSpec((3, 3 * Cu, Cout), const_map3),
            pl.BlockSpec((3, 3 * Cb, Cout), const_map3),
            pl.BlockSpec((3, 3 * Cout, Cout), const_map3),
            pl.BlockSpec((1, Cout), const_map2),
            pl.BlockSpec((1, Cout), const_map2),
        ],
        out_specs=pl.BlockSpec((1, TR, Wo, Cout), main_map),
        scratch_shapes=[
            pltpu.VMEM((TR + 4, Wo + 2, Cu), up.dtype),       # padded up slab
            pltpu.VMEM((TR + 4, Wo + 2, Cb), bridge.dtype),   # padded bridge slab
            pltpu.VMEM((TR + 2, Wo + 2, Cout), up.dtype),     # padded intermediate h slab
        ],
        compiler_params=pltpu.CompilerParams(
            dimension_semantics=("parallel", "parallel"),
            vmem_limit_bytes=vmem_limit),
        cost_estimate=pl.CostEstimate(flops=flops, transcendentals=0,
                                      bytes_accessed=bytes_accessed),
    )(up, up, up, bridge, bridge, bridge, w1u, w1b, w2f, b1r, b2r)


# ---------------------------------------------------------------------------
# Module
# ---------------------------------------------------------------------------
class UNetUpBlockPallas:
    """UNetUpBlock(fe_size, in_size, out_size, 'upconv', padding=True, batch_norm=False)."""

    def __init__(self, in_size, out_size, key, compute_dtype=jnp.float32):
        ks = jax.random.split(key, 6)
        s = 0.1
        # compute_dtype=jnp.bfloat16 in production: ~2x MXU throughput, half the HBM/DMA
        # bytes, and half the padded-scratch footprint (accumulation stays f32).
        self.compute_dtype = compute_dtype
        self.w_up = jax.random.normal(ks[0], (in_size, 2, 2, out_size), jnp.float32) * s
        self.b_up = jax.random.normal(ks[1], (out_size,), jnp.float32) * s
        self.w1 = jax.random.normal(ks[2], (3, 3, in_size, out_size), jnp.float32) * s
        self.b1 = jax.random.normal(ks[3], (out_size,), jnp.float32) * s
        self.w2 = jax.random.normal(ks[4], (3, 3, out_size, out_size), jnp.float32) * s
        self.b2 = jax.random.normal(ks[5], (out_size,), jnp.float32) * s

    def __call__(self, x_nchw, bridge_nchw):
        cd = self.compute_dtype
        x = jnp.transpose(x_nchw, (0, 2, 3, 1)).astype(cd)          # NCHW -> NHWC
        bridge = jnp.transpose(bridge_nchw, (0, 2, 3, 1)).astype(cd)
        # TODO(synk): fuse the upconv into the conv-block slab kernel to remove the
        #             intermediate `up` HBM round trip.
        up = upconv2x2_stride2(x, self.w_up.astype(cd), self.b_up)
        out = fused_double_conv3x3_relu(up, bridge, self.w1.astype(cd), self.b1,
                                        self.w2.astype(cd), self.b2)
        return jnp.transpose(out, (0, 3, 1, 2)).astype(x_nchw.dtype)  # back to NCHW


# ---------------------------------------------------------------------------
# Pure-JAX reference (for correctness check)
# ---------------------------------------------------------------------------
def reference(x_nchw, bridge_nchw, m):
    x = jnp.transpose(x_nchw, (0, 2, 3, 1))
    bridge = jnp.transpose(bridge_nchw, (0, 2, 3, 1))
    N, H, W, _ = x.shape
    Cout = m.w_up.shape[-1]
    up = jnp.einsum('nhwc,cpqo->nhpwqo', x, m.w_up).reshape(N, 2 * H, 2 * W, Cout) + m.b_up

    def conv(z, w, b):
        y = jax.lax.conv_general_dilated(
            z, w, window_strides=(1, 1), padding=((1, 1), (1, 1)),
            dimension_numbers=('NHWC', 'HWIO', 'NHWC'))
        return jnp.maximum(y + b, 0.0)

    cat = jnp.concatenate([up, bridge], axis=-1)
    out = conv(conv(cat, m.w1, m.b1), m.w2, m.b2)
    return jnp.transpose(out, (0, 3, 1, 2))


if __name__ == "__main__":
    key = jax.random.PRNGKey(0)
    k_param, k_x, k_b = jax.random.split(key, 3)

    in_size, out_size = 8, 4
    N, H, W = 2, 8, 8                         # bridge is (N, out_size, 2H, 2W)

    x = jax.random.normal(k_x, (N, in_size, H, W), jnp.float32)            # NCHW
    bridge = jax.random.normal(k_b, (N, out_size, 2 * H, 2 * W), jnp.float32)

    model = UNetUpBlockPallas(in_size, out_size, k_param)

    out = model(x, bridge)
    out = jax.block_until_ready(out)

    ref = jax.block_until_ready(reference(x, bridge, model))
    assert out.shape == (N, out_size, 2 * H, 2 * W), out.shape
    assert jnp.allclose(out, ref, rtol=1e-4, atol=1e-4), float(jnp.max(jnp.abs(out - ref)))

    print("KERNEL_OK")
</pallas_src>

<mosaic_0001>
module attributes {stable_mosaic.version = 11 : i64} {
  func.func @_upconv2x2_kernel(%arg0: i32, %arg1: memref<8x8x8xf32, #tpu.memory_space<vmem>>, %arg2: memref<2x8x8xf32, #tpu.memory_space<vmem>>, %arg3: memref<1x8xf32, #tpu.memory_space<vmem>>, %arg4: memref<8x2x8x8xf32, #tpu.memory_space<vmem>>) attributes {dimension_semantics = [#tpu.dimension_semantics<parallel>], iteration_bounds = array<i64: 2>, scalar_prefetch = 0 : i64, scratch_operands = 0 : i64, tpu.core_type = #tpu.core_type<tc>, window_params = [{transform_indices = @transform_0, window_bounds = array<i64: 8, 8, 8>}, {pipeline_mode = #tpu.pipeline_mode<synchronous>, transform_indices = @transform_1, window_bounds = array<i64: 2, 8, 8>}, {pipeline_mode = #tpu.pipeline_mode<synchronous>, transform_indices = @transform_2, window_bounds = array<i64: 1, 8>}, {transform_indices = @transform_3, window_bounds = array<i64: 8, 2, 8, 8>}]} {
    %c0 = arith.constant 0 : index
    %c0_0 = arith.constant 0 : index
    %c0_1 = arith.constant 0 : index
    %0 = vector.load %arg1[%c0, %c0_0, %c0_1] : memref<8x8x8xf32, #tpu.memory_space<vmem>>, vector<8x8x8xf32>
    %1 = vector.shape_cast %0 : vector<8x8x8xf32> to vector<64x8xf32>
    %c0_2 = arith.constant 0 : index
    %c0_3 = arith.constant 0 : index
    %c0_4 = arith.constant 0 : index
    %2 = vector.load %arg2[%c0_2, %c0_3, %c0_4] : memref<2x8x8xf32, #tpu.memory_space<vmem>>, vector<1x8x8xf32>
    %3 = vector.shape_cast %2 : vector<1x8x8xf32> to vector<8x8xf32>
    %cst = arith.constant dense<0.000000e+00> : vector<64x8xf32>
    %4 = tpu.matmul %1, %3, %cst {dimension_numbers = #tpu.dot_dimension_numbers<[1], [0], [0], [1], [0, 0, 1, 1], [], []>} : vector<64x8xf32>, vector<8x8xf32>, vector<64x8xf32> -> vector<64x8xf32>
    %c0_5 = arith.constant 0 : index
    %c0_6 = arith.constant 0 : index
    %5 = vector.load %arg3[%c0_5, %c0_6] : memref<1x8xf32, #tpu.memory_space<vmem>>, vector<1x8xf32>
    %6 = vector.broadcast %5 : vector<1x8xf32> to vector<64x8xf32>
    %7 = arith.addf %4, %6 : vector<64x8xf32>
    %8 = vector.shape_cast %7 : vector<64x8xf32> to vector<8x8x8xf32>
    %c0_7 = arith.constant 0 : index
    %c0_8 = arith.constant 0 : index
    %c0_9 = arith.constant 0 : index
    %c0_10 = arith.constant 0 : index
    %9 = vector.load %arg4[%c0_7, %c0_8, %c0_9, %c0_10] : memref<8x2x8x8xf32, #tpu.memory_space<vmem>>, vector<8x1x8x8xf32>
    %10 = vector.shape_cast %9 : vector<8x1x8x8xf32> to vector<8x8x8xf32>
    %11 = vector.shape_cast %8 : vector<8x8x8xf32> to vector<8x1x8x8xf32>
    tpu.vector_store %arg4[%c0_7, %c0_8, %c0_9, %c0_10], %11 {strides = array<i32>} : memref<8x2x8x8xf32, #tpu.memory_space<vmem>>, vector<8x1x8x8xf32>,
    %c1 = arith.constant 1 : index
    %c0_11 = arith.constant 0 : index
    %c0_12 = arith.constant 0 : index
    %12 = vector.load %arg2[%c1, %c0_11, %c0_12] : memref<2x8x8xf32, #tpu.memory_space<vmem>>, vector<1x8x8xf32>
    %13 = vector.shape_cast %12 : vector<1x8x8xf32> to vector<8x8xf32>
    %cst_13 = arith.constant dense<0.000000e+00> : vector<64x8xf32>
    %14 = tpu.matmul %1, %13, %cst_13 {dimension_numbers = #tpu.dot_dimension_numbers<[1], [0], [0], [1], [0, 0, 1, 1], [], []>} : vector<64x8xf32>, vector<8x8xf32>, vector<64x8xf32> -> vector<64x8xf32>
    %c0_14 = arith.constant 0 : index
    %c0_15 = arith.constant 0 : index
    %15 = vector.load %arg3[%c0_14, %c0_15] : memref<1x8xf32, #tpu.memory_space<vmem>>, vector<1x8xf32>
    %16 = vector.broadcast %15 : vector<1x8xf32> to vector<64x8xf32>
    %17 = arith.addf %14, %16 : vector<64x8xf32>
    %18 = vector.shape_cast %17 : vector<64x8xf32> to vector<8x8x8xf32>
    %c0_16 = arith.constant 0 : index
    %c1_17 = arith.constant 1 : index
    %c0_18 = arith.constant 0 : index
    %c0_19 = arith.constant 0 : index
    %19 = vector.load %arg4[%c0_16, %c1_17, %c0_18, %c0_19] : memref<8x2x8x8xf32, #tpu.memory_space<vmem>>, vector<8x1x8x8xf32>
    %20 = vector.shape_cast %19 : vector<8x1x8x8xf32> to vector<8x8x8xf32>
    %21 = vector.shape_cast %18 : vector<8x8x8xf32> to vector<8x1x8x8xf32>
    tpu.vector_store %arg4[%c0_16, %c1_17, %c0_18, %c0_19], %21 {strides = array<i32>} : memref<8x2x8x8xf32, #tpu.memory_space<vmem>>, vector<8x1x8x8xf32>,
    return
  }
  func.func @transform_0(%arg0: i32) -> (i32, i32, i32) {
    %c0_i32 = arith.constant 0 : i32
    %c0_i32_0 = arith.constant 0 : i32
    %c0_i32_1 = arith.constant 0 : i32
    return %arg0, %c0_i32, %c0_i32_0 : i32, i32, i32
  }
  func.func @transform_1(%arg0: i32) -> (i32, i32, i32) {
    %c0_i32 = arith.constant 0 : i32
    %c0_i32_0 = arith.constant 0 : i32
    %c0_i32_1 = arith.constant 0 : i32
    %c0_i32_2 = arith.constant 0 : i32
    return %c0_i32, %c0_i32_0, %c0_i32_1 : i32, i32, i32
  }
  func.func @transform_2(%arg0: i32) -> (i32, i32) {
    %c0_i32 = arith.constant 0 : i32
    %c0_i32_0 = arith.constant 0 : i32
    %c0_i32_1 = arith.constant 0 : i32
    return %c0_i32, %c0_i32_0 : i32, i32
  }
  func.func @transform_3(%arg0: i32) -> (i32, i32, i32, i32) {
    %c0_i32 = arith.constant 0 : i32
    %c0_i32_0 = arith.constant 0 : i32
    %c0_i32_1 = arith.constant 0 : i32
    %c0_i32_2 = arith.constant 0 : i32
    return %arg0, %c0_i32, %c0_i32_0, %c0_i32_1 : i32, i32, i32, i32
  }
}

</mosaic_0001>

<llo_original>
// kernel: tpu_custom_call.1
$region0: #{tpu_custom_call.1}
  #allocation0 [shape = 'u32[]', space=smem, size = 0x4, offset = 0x4, fixed_abs, tag = 'smem constant byte address 0x4 - core index']
  #allocation1 [shape = 'u32[144,128]{1,0:T(1,128)}', space=vmem, size = 0x12000, scoped, tag = 'internal scratch']
  %s0 = inlined_call_operand.hbm [shape: f32[16,8,8], index: 0, kind: input, shape index: {}]
  %s1 = inlined_call_operand.hbm [shape: f32[2,8,8], index: 1, kind: input, shape index: {}]
  %s2 = inlined_call_operand.hbm [shape: f32[1,8], index: 2, kind: input, shape index: {}]
  %s3 = inlined_call_operand.hbm [shape: f32[16,2,8,8], index: 3, kind: output, shape index: {}]
  %s4 = sld [smem:[#allocation0]]
  $region57: #{tpu_custom_call.1} parent=0
    _
  %s6 = ssub.s32 1, %s4
  %s7 = scalar_select 0, %s6, %s4
  $region1: #{tpu_custom_call.1} parent=0
    #allocation2 [shape = 'u8[65536]{0}', space=vmem, size = 0x10000, scoped, tag = 'input window, operand 0']
    #allocation3 [shape = 's32[2]{0}', space=sflag, size = 0x8, scoped, tag = 'scoped memory for tpu_custom_call.1']
    #allocation4 [shape = 's32[2]{0}', space=sflag, size = 0x8, scoped, tag = 'scoped memory for tpu_custom_call.1']
    #allocation5 [shape = 'u8[8192]{0}', space=vmem, size = 0x2000, scoped, tag = 'input window, operand 1, single buffered']
    #allocation6 [shape = 's32[1]{0}', space=sflag, size = 0x4, scoped, tag = 'scoped memory for tpu_custom_call.1']
    #allocation7 [shape = 'u8[512]{0}', space=vmem, size = 0x400, scoped, tag = 'input window, operand 2, single buffered']
    #allocation8 [shape = 'u8[131072]{0}', space=vmem, size = 0x20000, scoped, tag = 'output window, operand 0']
    %8 = vsyncpa [#allocation3], 0
    %s9 = scalar_lea.sflag [#allocation3], 1
    %10 = vsyncpa %s9, 0
    %11 = vsyncpa [#allocation6], 0
    %12 = vsyncpa [#allocation4], 0
    %s13 = scalar_lea.sflag [#allocation4], 1
    %14 = vsyncpa %s13, 0
    loop: start=0, step=1, limit=4
    $region2: #{tpu_custom_call.1} parent=1 // loop_pre_header
      _
    $region3: #{tpu_custom_call.1} parent=1 // loop_header
      %s16 = sphi 0, %s20
      %p17 = scmp.ge.s32.totalorder %s16, 4
      %s26 = sphi 0, %s28
      %s29 = sphi 0, %s26
      %s30 = sphi 0, %s29
      %s46 = sphi 0, %s30
      %s50 = sphi 0, %s50
      %s52 = sphi 0, %s50
      %s53 = sphi 0, %s52
      %s67 = sphi 0, %s53
      %s71 = sphi 0, %s71
      %s73 = sphi 0, %s71
      %s74 = sphi 0, %s73
      %s88 = sphi 0, %s74
      %s94 = sphi 0, %s96
      %s97 = sphi 0, %s94
      %s98 = sphi 0, %s97
      %s114 = sphi 0, %s98
    $region4: #{tpu_custom_call.1} parent=1 // loop_header_branch
      %19 = sbr.rel (%p17) target = $region8
    $region5: #{tpu_custom_call.1} parent=1 // loop_body
      %s21 = ssub.s32 %s16, 1
      %s22 = ssub.s32 %s16, 2
      %s23 = sadd.s32 %s16, 1
      %s24 = ssub.s32 %s16, %s23
      %p25 = scmp.eq.s32.totalorder %s24, 0
      %s27 = sadd.s32 %s26, 1
      %s28 = scalar_select %p25, %s26, %s27
      %p31 = pneg %p25
      %p32 = scmp.eq.s32.totalorder %s16, 1
      %p33 = por %p31, %p32
      %p34 = scmp.ne.s32.totalorder %s26, %s29
      %p35 = scmp.eq.s32.totalorder %s16, 0
      %p36 = por %p34, %p35
      %p37 = scmp.ne.s32.totalorder %s26, %s29
      %p38 = scmp.eq.s32.totalorder %s21, 1
      %p39 = por %p37, %p38
      %p40 = scmp.ne.s32.totalorder %s29, %s30
      %p41 = scmp.eq.s32.totalorder %s21, 0
      %p42 = por %p40, %p41
      %p43 = scmp.ne.s32.totalorder %s29, %s30
      %p44 = scmp.eq.s32.totalorder %s22, 1
      %p45 = por %p43, %p44
      %p47 = scmp.ne.s32.totalorder %s30, %s46
      %p48 = scmp.eq.s32.totalorder %s22, 0
      %p49 = por %p47, %p48
      %s51 = sadd.s32 %s50, 1
      %p54 = scmp.eq.s32.totalorder %s16, 1
      %p55 = scmp.ne.s32.totalorder %s50, %s52
      %p56 = scmp.eq.s32.totalorder %s16, 0
      %p57 = por %p55, %p56
      %p58 = scmp.ne.s32.totalorder %s50, %s52
      %p59 = scmp.eq.s32.totalorder %s21, 1
      %p60 = por %p58, %p59
      %p61 = scmp.ne.s32.totalorder %s52, %s53
      %p62 = scmp.eq.s32.totalorder %s21, 0
      %p63 = por %p61, %p62
      %p64 = scmp.ne.s32.totalorder %s52, %s53
      %p65 = scmp.eq.s32.totalorder %s22, 1
      %p66 = por %p64, %p65
      %p68 = scmp.ne.s32.totalorder %s53, %s67
      %p69 = scmp.eq.s32.totalorder %s22, 0
      %p70 = por %p68, %p69
      %s72 = sadd.s32 %s71, 1
      %p75 = scmp.eq.s32.totalorder %s16, 1
      %p76 = scmp.ne.s32.totalorder %s71, %s73
      %p77 = scmp.eq.s32.totalorder %s16, 0
      %p78 = por %p76, %p77
      %p79 = scmp.ne.s32.totalorder %s71, %s73
      %p80 = scmp.eq.s32.totalorder %s21, 1
      %p81 = por %p79, %p80
      %p82 = scmp.ne.s32.totalorder %s73, %s74
      %p83 = scmp.eq.s32.totalorder %s21, 0
      %p84 = por %p82, %p83
      %p85 = scmp.ne.s32.totalorder %s73, %s74
      %p86 = scmp.eq.s32.totalorder %s22, 1
      %p87 = por %p85, %p86
      %p89 = scmp.ne.s32.totalorder %s74, %s88
      %p90 = scmp.eq.s32.totalorder %s22, 0
      %p91 = por %p89, %p90
      %s92 = ssub.s32 %s16, %s23
      %p93 = scmp.eq.s32.totalorder %s92, 0
      %s95 = sadd.s32 %s94, 1
      %s96 = scalar_select %p93, %s94, %s95
      %p99 = pneg %p93
      %p100 = scmp.eq.s32.totalorder %s16, 1
      %p101 = por %p99, %p100
      %p102 = scmp.ne.s32.totalorder %s94, %s97
      %p103 = scmp.eq.s32.totalorder %s16, 0
      %p104 = por %p102, %p103
      %p105 = scmp.ne.s32.totalorder %s94, %s97
      %p106 = scmp.eq.s32.totalorder %s21, 1
      %p107 = por %p105, %p106
      %p108 = scmp.ne.s32.totalorder %s97, %s98
      %p109 = scmp.eq.s32.totalorder %s21, 0
      %p110 = por %p108, %p109
      %p111 = scmp.ne.s32.totalorder %s97, %s98
      %p112 = scmp.eq.s32.totalorder %s22, 1
      %p113 = por %p111, %p112
      %p115 = scmp.ne.s32.totalorder %s98, %s114
      %p116 = scmp.eq.s32.totalorder %s22, 0
      %p117 = por %p115, %p116
      %p118 = scmp.le.s32.totalorder 1, %s16
      %p119 = scmp.lt.s32.totalorder %s16, 3
      %p120 = pnand %p118, %p119
      %p121 = pneg %p120
      // Predicated region
      $region9: #{tpu_custom_call.1} parent=5 // pred_check
        _
      $region10: #{tpu_custom_call.1} parent=5 // pred_check_branch
        %123 = sbr.rel (%p120) target = $region12
      $region11: #{tpu_custom_call.1} parent=5 // pred_region
        %s124 = ssub.s32 %s16, 1
        // Predicated region
        $region13: #{tpu_custom_call.1} parent=11 // pred_check
          %p125 = pneg %p63
        $region14: #{tpu_custom_call.1} parent=11 // pred_check_branch
          %127 = sbr.rel (%p125) target = $region16
        $region15: #{tpu_custom_call.1} parent=11 // pred_region
          %s129 = ssub.s32 256, 256
          %130 = vsyncadd [#allocation6], %s129
          %s131 = sshll.u32 [#allocation5], 4
          %s132 = int_to_ptr.vmem [resolvable:$true] %s131
          %137 = dma.hbm_to_vmem [thread:$0]  %s1, 256, %s132, [#allocation6], 128, 128, 8
        $region16: #{tpu_custom_call.1} parent=11 // pred_fallthru
          _
        // Predicated region
        $region17: #{tpu_custom_call.1} parent=11 // pred_check
          %p138 = pneg %p84
        $region18: #{tpu_custom_call.1} parent=11 // pred_check_branch
          %140 = sbr.rel (%p138) target = $region20
        $region19: #{tpu_custom_call.1} parent=11 // pred_region
          %s142 = ssub.s32 16, 16
          %143 = vsyncadd [#allocation6], %s142
          %s145 = sshll.u32 [#allocation7], 4
          %s146 = int_to_ptr.vmem [resolvable:$true] %s145
          %148 = dma.hbm_to_vmem [thread:$0]  %s2, 16, %s146, [#allocation6]
        $region20: #{tpu_custom_call.1} parent=11 // pred_fallthru
          _
      $region12: #{tpu_custom_call.1} parent=5 // pred_fallthru
        _
      %p149 = scmp.lt.s32.totalorder %s16, 2
      // Predicated region
      $region21: #{tpu_custom_call.1} parent=5 // pred_check
        %p150 = pneg %p149
      $region22: #{tpu_custom_call.1} parent=5 // pred_check_branch
        %152 = sbr.rel (%p150) target = $region24
      $region23: #{tpu_custom_call.1} parent=5 // pred_region
        // Predicated region
        $region25: #{tpu_custom_call.1} parent=23 // pred_check
          %p153 = pneg %p36
        $region26: #{tpu_custom_call.1} parent=23 // pred_check_branch
          %155 = sbr.rel (%p153) target = $region28
        $region27: #{tpu_custom_call.1} parent=23 // pred_region
          %s156 = sand.u32 %s26, 1
          %s157 = scalar_lea.sflag [#allocation3], %s156
          %s158 = sand.u32 %s26, 1
          %s159 = smul.addr %s158, 64
          %s160 = scalar_lea.vmem [#allocation2], %s159
          %s161 = smul.u32 8, %s16
          %s163 = ssub.s32 1024, 1024
          %164 = vsyncadd %s157, %s163
          %s165 = smul.addr %s161, 128
          %s166 = scalar_lea.hbm %s0, %s165
          %s167 = sshll.u32 %s160, 4
          %s168 = int_to_ptr.vmem [resolvable:$true] %s167
          %173 = dma.hbm_to_vmem [thread:$0]  %s166, 1024, %s168, %s157, 128, 128, 8
        $region28: #{tpu_custom_call.1} parent=23 // pred_fallthru
          _
      $region24: #{tpu_custom_call.1} parent=5 // pred_fallthru
        _
      %p174 = scmp.le.s32.totalorder 1, %s16
      %p175 = scmp.lt.s32.totalorder %s16, 3
      %p176 = pnand %p174, %p175
      %p177 = pneg %p176
      // Predicated region
      $region29: #{tpu_custom_call.1} parent=5 // pred_check
        _
      $region30: #{tpu_custom_call.1} parent=5 // pred_check_branch
        %179 = sbr.rel (%p176) target = $region32
      $region31: #{tpu_custom_call.1} parent=5 // pred_region
        %s180 = ssub.s32 %s16, 1
        %s181 = sand.u32 %s29, 1
        %s182 = scalar_lea.sflag [#allocation3], %s181
        %s183 = sand.u32 %s29, 1
        %s184 = smul.addr %s183, 64
        %s185 = scalar_lea.vmem [#allocation2], %s184
        // Predicated region
        $region33: #{tpu_custom_call.1} parent=31 // pred_check
          %p186 = pneg %p42
        $region34: #{tpu_custom_call.1} parent=31 // pred_check_branch
          %188 = sbr.rel (%p186) target = $region36
        $region35: #{tpu_custom_call.1} parent=31 // pred_region
          %189 = dma.done %s182, 1024
        $region36: #{tpu_custom_call.1} parent=31 // pred_fallthru
          _
        // Predicated region
        $region37: #{tpu_custom_call.1} parent=31 // pred_check
          %p190 = pneg %p63
        $region38: #{tpu_custom_call.1} parent=31 // pred_check_branch
          %192 = sbr.rel (%p190) target = $region40
        $region39: #{tpu_custom_call.1} parent=31 // pred_region
          %193 = dma.done [#allocation6], 256
        $region40: #{tpu_custom_call.1} parent=31 // pred_fallthru
          _
        // Predicated region
        $region41: #{tpu_custom_call.1} parent=31 // pred_check
          %p194 = pneg %p84
        $region42: #{tpu_custom_call.1} parent=31 // pred_check_branch
          %196 = sbr.rel (%p194) target = $region44
        $region43: #{tpu_custom_call.1} parent=31 // pred_region
          %197 = dma.done [#allocation6], 16
        $region44: #{tpu_custom_call.1} parent=31 // pred_fallthru
          _
        %s198 = sand.u32 %s29, 1
        %s199 = scalar_lea.sflag [#allocation3], %s198
        %s200 = sand.u32 %s29, 1
        %s201 = smul.addr %s200, 64
        %s202 = scalar_lea.vmem [#allocation2], %s201
        %p203 = pneg %p42
        %p204 = pneg %p39
        %p205 = pneg %p63
        %p206 = pneg %p60
        %p207 = pneg %p84
        %p208 = pneg %p81
        %p209 = pneg %p110
        %p210 = pneg %p107
        %s211 = sand.u32 %s97, 1
        %s212 = scalar_lea.sflag [#allocation4], %s211
        %s213 = sand.u32 %s97, 1
        %s214 = smul.addr %s213, 128
        %s215 = scalar_lea.vmem [#allocation8], %s214
        %s216 = smul.u32 8, %s21
        %s217 = smul.u32 8, %s21
        %v218 = vld [vmem:[%s185] sm:$0xff]
        %v219 = vld [vmem:[%s185 + $0x8] sm:$0xff]
        %v220 = vld [vmem:[%s185 + $0x10] sm:$0xff]
        %v221 = vld [vmem:[%s185 + $0x18] sm:$0xff]
        %v222 = vld [vmem:[%s185 + $0x20] sm:$0xff]
        %v223 = vld [vmem:[%s185 + $0x28] sm:$0xff]
        %v224 = vld [vmem:[%s185 + $0x30] sm:$0xff]
        %v225 = vld [vmem:[%s185 + $0x38] sm:$0xff]
        %v226 = vld [vmem:[#allocation5] sm:$0xff]
        %v227 = vld [vmem:[#allocation7] sm:$0x1]
        %v229 = vlaneseq
        %v230 = vshrl.u32 %v229, 7
        %v231 = vsub.s32 0, %v230
        %v232 = vrot.slane %v227, %v231
        %vm234 = vcmask 64512
        %v236 = vsel %vm234, %v218, 0
        %v239 = vsel %vm234, %v219, 0
        %v242 = vsel %vm234, %v220, 0
        %v245 = vsel %vm234, %v221, 0
        %v248 = vsel %vm234, %v222, 0
        %v251 = vsel %vm234, %v223, 0
        %v254 = vsel %vm234, %v224, 0
        %v257 = vsel %vm234, %v225, 0
        %259 = vmatprep.subr.mxu0 0.0
        %260 = vmatpush1.msra.mxu0 %v226
        %261 = vmatprep.subr.mxu0 0.0
        %262 = vmatpush1.msra.mxu0 0.0
        %263 = vmatprep.subr.mxu0 0.0
        %264 = vmatpush1.msra.mxu0 0.0
        %265 = vmatprep.subr.mxu0 0.0
        %266 = vmatpush1.msra.mxu0 0.0
        %267 = vmatprep.subr.mxu0 0.0
        %268 = vmatpush1.msra.mxu0 0.0
        %269 = vmatprep.subr.mxu0 0.0
        %270 = vmatpush1.msra.mxu0 0.0
        %271 = vmatprep.subr.mxu0 0.0
        %272 = vmatpush1.msra.mxu0 0.0
        %273 = vmatprep.subr.mxu0 0.0
        %274 = vmatpush1.msra.mxu0 0.0
        %275 = vmatprep.subr.mxu0 0.0
        %276 = vmatpush1.msra.mxu0 0.0
        %277 = vmatprep.subr.mxu0 0.0
        %278 = vmatpush1.msra.mxu0 0.0
        %279 = vmatprep.subr.mxu0 0.0
        %280 = vmatpush1.msra.mxu0 0.0
        %281 = vmatprep.subr.mxu0 0.0
        %282 = vmatpush1.msra.mxu0 0.0
        %283 = vmatprep.subr.mxu0 0.0
        %284 = vmatpush1.msra.mxu0 0.0
        %285 = vmatprep.subr.mxu0 0.0
        %286 = vmatpush1.msra.mxu0 0.0
        %287 = vmatprep.subr.mxu0 0.0
        %288 = vmatpush1.msra.mxu0 0.0
        %289 = vmatprep.subr.mxu0 0.0
        %290 = vmatpush1.msra.mxu0 0.0
        %291 = vmatprep.subr.mxu0 0.0
        %292 = vmatpush1.msra.mxu0 0.0
        %293 = vmatprep.subr.mxu0 0.0
        %294 = vmatpush1.msra.mxu0 0.0
        %295 = vmatprep.subr.mxu0 0.0
        %296 = vmatpush1.msra.mxu0 0.0
        %297 = vmatprep.subr.mxu0 0.0
        %298 = vmatpush1.msra.mxu0 0.0
        %299 = vmatprep.subr.mxu0 0.0
        %300 = vmatpush1.msra.mxu0 0.0
        %301 = vmatprep.subr.mxu0 0.0
        %302 = vmatpush1.msra.mxu0 0.0
        %303 = vmatprep.subr.mxu0 0.0
        %304 = vmatpush1.msra.mxu0 0.0
        %305 = vmatprep.subr.mxu0 0.0
        %306 = vmatpush1.msra.mxu0 0.0
        %307 = vmatprep.subr.mxu0 0.0
        %308 = vmatpush1.msra.mxu0 0.0
        %309 = vmatprep.subr.mxu0 0.0
        %310 = vmatpush1.msra.mxu0 0.0
        %311 = vmatprep.subr.mxu0 0.0
        %312 = vmatpush1.msra.mxu0 0.0
        %313 = vmatprep.subr.mxu0 0.0
        %314 = vmatpush1.msra.mxu0 0.0
        %315 = vmatprep.subr.mxu0 0.0
        %316 = vmatpush1.msra.mxu0 0.0
        %317 = vmatprep.subr.mxu0 0.0
        %318 = vmatpush1.msra.mxu0 0.0
        %319 = vmatprep.subr.mxu0 0.0
        %320 = vmatpush1.msra.mxu0 0.0
        %321 = vmatprep.subr.mxu0 0.0
        %322 = vmatpush1.msra.mxu0 0.0
        %323 = vmatprep.mubr.f32.mxu0 0.0
        %324 = vmatmul.mubr.f32.gmra.mrb[0].mxu0 %v236
        %v325 = vpop.f32.mrb[0].mxu0
        %v326 = vadd.f32 %v232, %v325
        %v327 = vpop.f32.mrb[0].mxu0
        %328 = vmatprep.mubr.f32.mxu0 0.0
        %329 = vmatmul.mubr.f32.gmra.mrb[0].mxu0 %v239
        %v330 = vpop.f32.mrb[0].mxu0
        %v331 = vadd.f32 %v232, %v330
        %v332 = vpop.f32.mrb[0].mxu0
        %333 = vmatprep.mubr.f32.mxu0 0.0
        %334 = vmatmul.mubr.f32.gmra.mrb[0].mxu0 %v242
        %v335 = vpop.f32.mrb[0].mxu0
        %v336 = vadd.f32 %v232, %v335
        %v337 = vpop.f32.mrb[0].mxu0
        %338 = vmatprep.mubr.f32.mxu0 0.0
        %339 = vmatmul.mubr.f32.gmra.mrb[0].mxu0 %v245
        %v340 = vpop.f32.mrb[0].mxu0
        %v341 = vadd.f32 %v232, %v340
        %v342 = vpop.f32.mrb[0].mxu0
        %343 = vmatprep.mubr.f32.mxu0 0.0
        %344 = vmatmul.mubr.f32.gmra.mrb[0].mxu0 %v248
        %v345 = vpop.f32.mrb[0].mxu0
        %v346 = vadd.f32 %v232, %v345
        %v347 = vpop.f32.mrb[0].mxu0
        %348 = vmatprep.mubr.f32.mxu0 0.0
        %349 = vmatmul.mubr.f32.gmra.mrb[0].mxu0 %v251
        %v350 = vpop.f32.mrb[0].mxu0
        %v351 = vadd.f32 %v232, %v350
        %v352 = vpop.f32.mrb[0].mxu0
        %353 = vmatprep.mubr.f32.mxu0 0.0
        %354 = vmatmul.mubr.f32.gmra.mrb[0].mxu0 %v254
        %v355 = vpop.f32.mrb[0].mxu0
        %v356 = vadd.f32 %v232, %v355
        %v357 = vpop.f32.mrb[0].mxu0
        %358 = vmatprep.mubr.f32.mxu0 0.0
        %359 = vmatmul.mubr.f32.gmra.mrb[0].mxu0 %v257
        %v360 = vpop.f32.mrb[0].mxu0
        %v361 = vadd.f32 %v232, %v360
        %v362 = vpop.f32.mrb[0].mxu0
        %363 = vdwg.mxu0
        %364 = vst.msk [vmem:[%s215] sm:$0xff] %vm234, %v326
        %365 = vst.msk [vmem:[%s215 + $0x10] sm:$0xff] %vm234, %v331
        %366 = vst.msk [vmem:[%s215 + $0x20] sm:$0xff] %vm234, %v336
        %367 = vst.msk [vmem:[%s215 + $0x30] sm:$0xff] %vm234, %v341
        %368 = vst.msk [vmem:[%s215 + $0x40] sm:$0xff] %vm234, %v346
        %369 = vst.msk [vmem:[%s215 + $0x50] sm:$0xff] %vm234, %v351
        %370 = vst.msk [vmem:[%s215 + $0x60] sm:$0xff] %vm234, %v356
        %371 = vst.msk [vmem:[%s215 + $0x70] sm:$0xff] %vm234, %v361
        %s372 = scalar_lea.vmem [#allocation5], 8
        %v373 = vld [vmem:[%s372] sm:$0xff]
        %v374 = vld [vmem:[#allocation7] sm:$0x1]
        %v376 = vlaneseq
        %v377 = vshrl.u32 %v376, 7
        %v378 = vsub.s32 0, %v377
        %v379 = vrot.slane %v374, %v378
        %381 = vmatprep.subr.mxu0 0.0
        %382 = vmatpush1.msra.mxu0 %v373
        %383 = vmatprep.subr.mxu0 0.0
        %384 = vmatpush1.msra.mxu0 0.0
        %385 = vmatprep.subr.mxu0 0.0
        %386 = vmatpush1.msra.mxu0 0.0
        %387 = vmatprep.subr.mxu0 0.0
        %388 = vmatpush1.msra.mxu0 0.0
        %389 = vmatprep.subr.mxu0 0.0
        %390 = vmatpush1.msra.mxu0 0.0
        %391 = vmatprep.subr.mxu0 0.0
        %392 = vmatpush1.msra.mxu0 0.0
        %393 = vmatprep.subr.mxu0 0.0
        %394 = vmatpush1.msra.mxu0 0.0
        %395 = vmatprep.subr.mxu0 0.0
        %396 = vmatpush1.msra.mxu0 0.0
        %397 = vmatprep.subr.mxu0 0.0
        %398 = vmatpush1.msra.mxu0 0.0
        %399 = vmatprep.subr.mxu0 0.0
        %400 = vmatpush1.msra.mxu0 0.0
        %401 = vmatprep.subr.mxu0 0.0
        %402 = vmatpush1.msra.mxu0 0.0
        %403 = vmatprep.subr.mxu0 0.0
        %404 = vmatpush1.msra.mxu0 0.0
        %405 = vmatprep.subr.mxu0 0.0
        %406 = vmatpush1.msra.mxu0 0.0
        %407 = vmatprep.subr.mxu0 0.0
        %408 = vmatpush1.msra.mxu0 0.0
        %409 = vmatprep.subr.mxu0 0.0
        %410 = vmatpush1.msra.mxu0 0.0
        %411 = vmatprep.subr.mxu0 0.0
        %412 = vmatpush1.msra.mxu0 0.0
        %413 = vmatprep.subr.mxu0 0.0
        %414 = vmatpush1.msra.mxu0 0.0
        %415 = vmatprep.subr.mxu0 0.0
        %416 = vmatpush1.msra.mxu0 0.0
        %417 = vmatprep.subr.mxu0 0.0
        %418 = vmatpush1.msra.mxu0 0.0
        %419 = vmatprep.subr.mxu0 0.0
        %420 = vmatpush1.msra.mxu0 0.0
        %421 = vmatprep.subr.mxu0 0.0
        %422 = vmatpush1.msra.mxu0 0.0
        %423 = vmatprep.subr.mxu0 0.0
        %424 = vmatpush1.msra.mxu0 0.0
        %425 = vmatprep.subr.mxu0 0.0
        %426 = vmatpush1.msra.mxu0 0.0
        %427 = vmatprep.subr.mxu0 0.0
        %428 = vmatpush1.msra.mxu0 0.0
        %429 = vmatprep.subr.mxu0 0.0
        %430 = vmatpush1.msra.mxu0 0.0
        %431 = vmatprep.subr.mxu0 0.0
        %432 = vmatpush1.msra.mxu0 0.0
        %433 = vmatprep.subr.mxu0 0.0
        %434 = vmatpush1.msra.mxu0 0.0
        %435 = vmatprep.subr.mxu0 0.0
        %436 = vmatpush1.msra.mxu0 0.0
        %437 = vmatprep.subr.mxu0 0.0
        %438 = vmatpush1.msra.mxu0 0.0
        %439 = vmatprep.subr.mxu0 0.0
        %440 = vmatpush1.msra.mxu0 0.0
        %441 = vmatprep.subr.mxu0 0.0
        %442 = vmatpush1.msra.mxu0 0.0
        %443 = vmatprep.subr.mxu0 0.0
        %444 = vmatpush1.msra.mxu0 0.0
        %445 = vmatprep.mubr.f32.mxu0 0.0
        %446 = vmatmul.mubr.f32.gmra.mrb[0].mxu0 %v236
        %v447 = vpop.f32.mrb[0].mxu0
        %v448 = vadd.f32 %v379, %v447
        %v449 = vpop.f32.mrb[0].mxu0
        %450 = vmatprep.mubr.f32.mxu0 0.0
        %451 = vmatmul.mubr.f32.gmra.mrb[0].mxu0 %v239
        %v452 = vpop.f32.mrb[0].mxu0
        %v453 = vadd.f32 %v379, %v452
        %v454 = vpop.f32.mrb[0].mxu0
        %455 = vmatprep.mubr.f32.mxu0 0.0
        %456 = vmatmul.mubr.f32.gmra.mrb[0].mxu0 %v242
        %v457 = vpop.f32.mrb[0].mxu0
        %v458 = vadd.f32 %v379, %v457
        %v459 = vpop.f32.mrb[0].mxu0
        %460 = vmatprep.mubr.f32.mxu0 0.0
        %461 = vmatmul.mubr.f32.gmra.mrb[0].mxu0 %v245
        %v462 = vpop.f32.mrb[0].mxu0
        %v463 = vadd.f32 %v379, %v462
        %v464 = vpop.f32.mrb[0].mxu0
        %465 = vmatprep.mubr.f32.mxu0 0.0
        %466 = vmatmul.mubr.f32.gmra.mrb[0].mxu0 %v248
        %v467 = vpop.f32.mrb[0].mxu0
        %v468 = vadd.f32 %v379, %v467
        %v469 = vpop.f32.mrb[0].mxu0
        %470 = vmatprep.mubr.f32.mxu0 0.0
        %471 = vmatmul.mubr.f32.gmra.mrb[0].mxu0 %v251
        %v472 = vpop.f32.mrb[0].mxu0
        %v473 = vadd.f32 %v379, %v472
        %v474 = vpop.f32.mrb[0].mxu0
        %475 = vmatprep.mubr.f32.mxu0 0.0
        %476 = vmatmul.mubr.f32.gmra.mrb[0].mxu0 %v254
        %v477 = vpop.f32.mrb[0].mxu0
        %v478 = vadd.f32 %v379, %v477
        %v479 = vpop.f32.mrb[0].mxu0
        %480 = vmatprep.mubr.f32.mxu0 0.0
        %481 = vmatmul.mubr.f32.gmra.mrb[0].mxu0 %v257
        %v482 = vpop.f32.mrb[0].mxu0
        %v483 = vadd.f32 %v379, %v482
        %v484 = vpop.f32.mrb[0].mxu0
        %485 = vdwg.mxu0
        %s486 = scalar_lea.vmem %s215, 8 [#allocation8]
        %487 = vst.msk [vmem:[%s486] sm:$0xff] %vm234, %v448
        %488 = vst.msk [vmem:[%s486 + $0x10] sm:$0xff] %vm234, %v453
        %489 = vst.msk [vmem:[%s486 + $0x20] sm:$0xff] %vm234, %v458
        %490 = vst.msk [vmem:[%s486 + $0x30] sm:$0xff] %vm234, %v463
        %491 = vst.msk [vmem:[%s486 + $0x40] sm:$0xff] %vm234, %v468
        %492 = vst.msk [vmem:[%s486 + $0x50] sm:$0xff] %vm234, %v473
        %493 = vst.msk [vmem:[%s486 + $0x60] sm:$0xff] %vm234, %v478
        %494 = vst.msk [vmem:[%s486 + $0x70] sm:$0xff] %vm234, %v483
        %s495 = sand.u32 %s97, 1
        %s496 = scalar_lea.sflag [#allocation4], %s495
        %s497 = sand.u32 %s97, 1
        %s498 = smul.addr %s497, 128
        %s499 = scalar_lea.vmem [#allocation8], %s498
        // Predicated region
        $region45: #{tpu_custom_call.1} parent=31 // pred_check
          %p500 = pneg %p107
        $region46: #{tpu_custom_call.1} parent=31 // pred_check_branch
          %502 = sbr.rel (%p500) target = $region48
        $region47: #{tpu_custom_call.1} parent=31 // pred_region
          %s503 = smul.u32 8, %s21
          %s505 = ssub.s32 2048, 2048
          %506 = vsyncadd %s496, %s505
          %s507 = smul.addr %s503, 2
          %s508 = smul.addr %s507, 128
          %s509 = scalar_lea.hbm %s3, %s508
          %s510 = sshll.u32 %s499, 4
          %s511 = int_to_ptr.vmem [resolvable:$true] %s510
          %516 = dma.vmem_to_hbm [thread:$0]  %s511, 2048, %s509, %s496, 128, 128, 8
        $region48: #{tpu_custom_call.1} parent=31 // pred_fallthru
          _
      $region32: #{tpu_custom_call.1} parent=5 // pred_fallthru
        _
      %p517 = scmp.le.s32.totalorder 2, %s16
      // Predicated region
      $region49: #{tpu_custom_call.1} parent=5 // pred_check
        %p518 = pneg %p517
      $region50: #{tpu_custom_call.1} parent=5 // pred_check_branch
        %520 = sbr.rel (%p518) target = $region52
      $region51: #{tpu_custom_call.1} parent=5 // pred_region
        %s521 = ssub.s32 %s16, 2
        // Predicated region
        $region53: #{tpu_custom_call.1} parent=51 // pred_check
          %p522 = pneg %p113
        $region54: #{tpu_custom_call.1} parent=51 // pred_check_branch
          %524 = sbr.rel (%p522) target = $region56
        $region55: #{tpu_custom_call.1} parent=51 // pred_region
          %s525 = sand.u32 %s98, 1
          %s526 = scalar_lea.sflag [#allocation4], %s525
          %s527 = sand.u32 %s98, 1
          %s528 = smul.addr %s527, 128
          %s529 = scalar_lea.vmem [#allocation8], %s528
          %530 = dma.done %s526, 2048
        $region56: #{tpu_custom_call.1} parent=51 // pred_fallthru
          _
      $region52: #{tpu_custom_call.1} parent=5 // pred_fallthru
        _
    $region6: #{tpu_custom_call.1} parent=1 // loop_footer
      %s20 = sadd.s32 1, %s16
    $region7: #{tpu_custom_call.1} parent=1 // loop_footer_branch
      %15 = sbr.rel target = $region3
    $region8: #{tpu_custom_call.1} parent=1 // loop_exit
      _
    %531 = vsyncpa [#allocation3], 1
    %s532 = scalar_lea.sflag [#allocation3], 1
    %533 = vsyncpa %s532, 1
    %534 = vsyncpa [#allocation6], 1
    %535 = vsyncpa [#allocation4], 1
    %s536 = scalar_lea.sflag [#allocation4], 1
    %537 = vsyncpa %s536, 1

</llo_original>
